<compile_context>
chip_gen: v7x
topology: tpu7x:2x2x1
jax: 0.10.0
libtpu: 0.0.40
codegen_flags: <defaults>
</compile_context>

<pallas_src>
import functools

import jax
import jax.numpy as jnp
from jax.experimental import pallas as pl
from jax.experimental.pallas import tpu as pltpu


LANE = 128     # pad every feature dimension to a full lane width
SUBLANE = 8    # pad the node dimension to a multiple of the sublane count


# ----------------------------- Pallas kernel -------------------------------

def _fused_gnn_kernel(x_ref, a_ref, w_ref, b_ref, o_ref, *, layers_mp: int):
    """Entire GNN forward: pre_mp Linear+ReLU -> layers_mp GCN layers -> head.

    x_ref : [N, LANE]                 bf16  node features (zero-padded lanes)
    a_ref : [N, N]                    bf16  normalized adjacency (loaded once)
    w_ref : [2+layers_mp, LANE, LANE] bf16  all layer weights (zero-padded)
    b_ref : [2+layers_mp, LANE]       f32   all biases (zero-padded)
    o_ref : [N, LANE]                 f32   lane-dense head output (sliced outside)
    """
    a = a_ref[...]                      # A_hat resident in VMEM for all GCN layers
    b_all = b_ref[...]

    # pre_mp: Linear(dim_in -> dim_inner) + ReLU   (dropout = identity in eval)
    h = jnp.dot(x_ref[...], w_ref[0], preferred_element_type=jnp.float32)
    # ReLU in f32, re-cast to bf16 fused into the store (MXU input for next layer).
    h = jnp.maximum(h + b_all[0][None, :], 0.0).astype(jnp.bfloat16)

    # mp: stacked GCN layers: ReLU(A_hat @ (H W) + b)
    for l in range(layers_mp):
        xw = jnp.dot(h, w_ref[1 + l], preferred_element_type=jnp.float32)
        agg = jnp.dot(a, xw.astype(jnp.bfloat16),
                      preferred_element_type=jnp.float32)
        h = jnp.maximum(agg + b_all[1 + l][None, :], 0.0).astype(jnp.bfloat16)

    # post_mp head: Linear(dim_inner -> dim_out), no activation
    out = jnp.dot(h, w_ref[1 + layers_mp], preferred_element_type=jnp.float32)
    o_ref[...] = (out + b_all[1 + layers_mp][None, :]).astype(o_ref.dtype)


# ----------------------------- wrapper --------------------------------------

def _full_spec(shape):
    zeros = (0,) * len(shape)
    return pl.BlockSpec(shape, lambda i, _z=zeros: _z)


def _pad_weight(w):
    out = jnp.zeros((LANE, LANE), jnp.bfloat16)
    return out.at[:w.shape[0], :w.shape[1]].set(w.astype(jnp.bfloat16))


def _pad_bias(b):
    b = b.reshape(-1).astype(jnp.float32)
    return jnp.zeros((LANE,), jnp.float32).at[:b.shape[0]].set(b)


def _round_up(x, m):
    return ((x + m - 1) // m) * m


def gnn_forward(params, node_feature, a_hat, *, layers_mp):
    """Eval-mode forward (dropout = identity). Single fused Pallas call."""
    n, dim_in = node_feature.shape
    dim_inner = params["pre_w"].shape[1]
    dim_out = params["head_w"].shape[1]
    n_pad = _round_up(n, SUBLANE)

    # Lane/sublane-pad and pack everything once (layout plumbing, outside kernel).
    x_pad = jnp.zeros((n_pad, LANE), jnp.bfloat16)
    x_pad = x_pad.at[:n, :dim_in].set(node_feature.astype(jnp.bfloat16))

    a_pad = jnp.zeros((n_pad, n_pad), jnp.bfloat16)
    a_pad = a_pad.at[:n, :n].set(a_hat.astype(jnp.bfloat16))

    w_stack = jnp.stack([_pad_weight(params["pre_w"])]
                        + [_pad_weight(w) for w in params["mp_w"]]
                        + [_pad_weight(params["head_w"])])
    b_stack = jnp.stack([_pad_bias(params["pre_b"])]
                        + [_pad_bias(b) for b in params["mp_b"]]
                        + [_pad_bias(params["head_b"])])

    # Advisory cost hint for the XLA scheduler (all matmuls on padded shapes).
    n_mm = 2 + 2 * layers_mp                    # pre + (XW, AXW)*L + head
    flops = 2 * n_pad * LANE * LANE * (n_mm - 1) + 2 * n_pad * n_pad * LANE * layers_mp
    bytes_accessed = (x_pad.size + a_pad.size + w_stack.size) * 2 \
                     + b_stack.size * 4 + n_pad * LANE * 4

    out_pad = pl.pallas_call(
        functools.partial(_fused_gnn_kernel, layers_mp=layers_mp),
        out_shape=jax.ShapeDtypeStruct((n_pad, LANE), jnp.float32),
        grid=(1,),
        in_specs=[_full_spec(x_pad.shape), _full_spec(a_pad.shape),
                  _full_spec(w_stack.shape), _full_spec(b_stack.shape)],
        out_specs=_full_spec((n_pad, LANE)),
        compiler_params=pltpu.CompilerParams(
            dimension_semantics=("arbitrary",)),
        cost_estimate=pl.CostEstimate(flops=flops, transcendentals=0,
                                      bytes_accessed=bytes_accessed),
    )(x_pad, a_pad, w_stack, b_stack)

    del dim_inner
    return out_pad[:n, :dim_out]


# ----------------------------- model / init ---------------------------------

def init_gnn_params(key, dim_in, dim_inner, dim_out, layers_mp):
    """Deterministic Glorot-uniform-ish init for all layers."""
    params = {}

    def glorot(k, shape):
        fan_in, fan_out = shape
        lim = jnp.sqrt(6.0 / (fan_in + fan_out))
        return jax.random.uniform(k, shape, jnp.float32, -lim, lim)

    keys = jax.random.split(key, 2 + layers_mp)
    params["pre_w"] = glorot(keys[0], (dim_in, dim_inner))
    params["pre_b"] = jnp.zeros((1, dim_inner), jnp.float32)
    params["mp_w"] = [glorot(keys[1 + l], (dim_inner, dim_inner))
                      for l in range(layers_mp)]
    params["mp_b"] = [jnp.zeros((1, dim_inner), jnp.float32)
                      for _ in range(layers_mp)]
    params["head_w"] = glorot(keys[-1], (dim_inner, dim_out))
    params["head_b"] = jnp.zeros((1, dim_out), jnp.float32)
    return params


def build_normalized_adjacency(key, n_nodes, edge_prob=0.1):
    """Dense symmetric random graph with self loops, GCN normalization."""
    u = jax.random.uniform(key, (n_nodes, n_nodes))
    adj = (u < edge_prob).astype(jnp.float32)
    adj = jnp.maximum(adj, adj.T)                       # symmetrize
    adj = adj + jnp.eye(n_nodes, dtype=jnp.float32)     # self loops
    adj = jnp.minimum(adj, 1.0)
    deg = jnp.sum(adj, axis=1)
    d_inv_sqrt = 1.0 / jnp.sqrt(deg)
    return adj * d_inv_sqrt[:, None] * d_inv_sqrt[None, :]


def reference_forward_bf16(params, node_feature, a_hat):
    """Plain-JAX reference with the same bf16-input / f32-accum matmuls."""
    bf = jnp.bfloat16
    a = a_hat.astype(bf)
    h = jnp.dot(node_feature.astype(bf), params["pre_w"].astype(bf),
                preferred_element_type=jnp.float32)
    h = jnp.maximum(h + params["pre_b"], 0.0)
    for w, b in zip(params["mp_w"], params["mp_b"]):
        xw = jnp.dot(h.astype(bf), w.astype(bf),
                     preferred_element_type=jnp.float32)
        h = jnp.dot(a, xw.astype(bf), preferred_element_type=jnp.float32)
        h = jnp.maximum(h + b, 0.0)
    h = jnp.dot(h.astype(bf), params["head_w"].astype(bf),
                preferred_element_type=jnp.float32)
    return h + params["head_b"]


# ----------------------------- main ------------------------------------------

if __name__ == "__main__":
    N_NODES = 128      # nodes
    DIM_IN = 16        # raw node-feature dim
    DIM_INNER = 32     # cfg.gnn.dim_inner
    DIM_OUT = 8        # head output dim
    LAYERS_MP = 2      # cfg.gnn.layers_mp

    key = jax.random.PRNGKey(0)
    k_feat, k_adj, k_par = jax.random.split(key, 3)

    node_feature = jax.random.normal(k_feat, (N_NODES, DIM_IN), jnp.float32)
    a_hat = build_normalized_adjacency(k_adj, N_NODES)
    params = init_gnn_params(k_par, DIM_IN, DIM_INNER, DIM_OUT, LAYERS_MP)

    out = gnn_forward(params, node_feature, a_hat, layers_mp=LAYERS_MP)
    out = jax.block_until_ready(out)
    assert out.shape == (N_NODES, DIM_OUT)

    # bf16-matched reference (tight tolerance)
    ref_bf = reference_forward_bf16(params, node_feature, a_hat)
    assert jnp.allclose(out, ref_bf, atol=5e-3, rtol=5e-3), (
        float(jnp.max(jnp.abs(out - ref_bf))))

    # f32 reference (loose tolerance -> bf16 adjacency/activation rounding only)
    ref = jnp.maximum(node_feature @ params["pre_w"] + params["pre_b"], 0.0)
    for w, b in zip(params["mp_w"], params["mp_b"]):
        ref = jnp.maximum(a_hat @ (ref @ w) + b, 0.0)
    ref = ref @ params["head_w"] + params["head_b"]
    assert jnp.allclose(out, ref, atol=5e-2, rtol=5e-2), (
        float(jnp.max(jnp.abs(out - ref))))

    print("KERNEL_OK")
</pallas_src>

<mosaic_0001>
module attributes {stable_mosaic.version = 11 : i64} {
  func.func @_fused_gnn_kernel(%arg0: i32, %arg1: memref<128x128xbf16, #tpu.memory_space<vmem>>, %arg2: memref<128x128xbf16, #tpu.memory_space<vmem>>, %arg3: memref<4x128x128xbf16, #tpu.memory_space<vmem>>, %arg4: memref<4x128xf32, #tpu.memory_space<vmem>>, %arg5: memref<128x128xf32, #tpu.memory_space<vmem>>) attributes {dimension_semantics = [#tpu.dimension_semantics<arbitrary>], iteration_bounds = array<i64: 1>, scalar_prefetch = 0 : i64, scratch_operands = 0 : i64, tpu.core_type = #tpu.core_type<tc>, window_params = [{pipeline_mode = #tpu.pipeline_mode<synchronous>, transform_indices = @transform_0, window_bounds = array<i64: 128, 128>}, {pipeline_mode = #tpu.pipeline_mode<synchronous>, transform_indices = @transform_1, window_bounds = array<i64: 128, 128>}, {pipeline_mode = #tpu.pipeline_mode<synchronous>, transform_indices = @transform_2, window_bounds = array<i64: 4, 128, 128>}, {pipeline_mode = #tpu.pipeline_mode<synchronous>, transform_indices = @transform_3, window_bounds = array<i64: 4, 128>}, {pipeline_mode = #tpu.pipeline_mode<synchronous>, transform_indices = @transform_4, window_bounds = array<i64: 128, 128>}]} {
    %c0 = arith.constant 0 : index
    %c0_0 = arith.constant 0 : index
    %0 = vector.load %arg2[%c0, %c0_0] : memref<128x128xbf16, #tpu.memory_space<vmem>>, vector<128x128xbf16>
    %c0_1 = arith.constant 0 : index
    %c0_2 = arith.constant 0 : index
    %1 = vector.load %arg4[%c0_1, %c0_2] : memref<4x128xf32, #tpu.memory_space<vmem>>, vector<4x128xf32>
    %c0_3 = arith.constant 0 : index
    %c0_4 = arith.constant 0 : index
    %2 = vector.load %arg1[%c0_3, %c0_4] : memref<128x128xbf16, #tpu.memory_space<vmem>>, vector<128x128xbf16>
    %c0_5 = arith.constant 0 : index
    %c0_6 = arith.constant 0 : index
    %c0_7 = arith.constant 0 : index
    %3 = vector.load %arg3[%c0_5, %c0_6, %c0_7] : memref<4x128x128xbf16, #tpu.memory_space<vmem>>, vector<1x128x128xbf16>
    %4 = vector.shape_cast %3 : vector<1x128x128xbf16> to vector<128x128xbf16>
    %cst = arith.constant dense<0.000000e+00> : vector<128x128xf32>
    %5 = tpu.matmul %2, %4, %cst {dimension_numbers = #tpu.dot_dimension_numbers<[1], [0], [0], [1], [0, 0, 1, 1], [], []>} : vector<128x128xbf16>, vector<128x128xbf16>, vector<128x128xf32> -> vector<128x128xf32>
    %6 = vector.extract_strided_slice %1 {offsets = [0, 0], sizes = [1, 128], strides = [1, 1]} : vector<4x128xf32> to vector<1x128xf32>
    %7 = vector.shape_cast %6 : vector<1x128xf32> to vector<128xf32>
    %8 = vector.shape_cast %7 : vector<128xf32> to vector<1x128xf32>
    %9 = vector.broadcast %8 : vector<1x128xf32> to vector<128x128xf32>
    %10 = arith.addf %5, %9 : vector<128x128xf32>
    %cst_8 = arith.constant 0.000000e+00 : f32
    %11 = vector.broadcast %cst_8 : f32 to vector<128x128xf32>
    %12 = arith.maximumf %10, %11 : vector<128x128xf32>
    %13 = arith.truncf %12 : vector<128x128xf32> to vector<128x128xbf16>
    %c1 = arith.constant 1 : index
    %c0_9 = arith.constant 0 : index
    %c0_10 = arith.constant 0 : index
    %14 = vector.load %arg3[%c1, %c0_9, %c0_10] : memref<4x128x128xbf16, #tpu.memory_space<vmem>>, vector<1x128x128xbf16>
    %15 = vector.shape_cast %14 : vector<1x128x128xbf16> to vector<128x128xbf16>
    %cst_11 = arith.constant dense<0.000000e+00> : vector<128x128xf32>
    %16 = tpu.matmul %13, %15, %cst_11 {dimension_numbers = #tpu.dot_dimension_numbers<[1], [0], [0], [1], [0, 0, 1, 1], [], []>} : vector<128x128xbf16>, vector<128x128xbf16>, vector<128x128xf32> -> vector<128x128xf32>
    %17 = arith.truncf %16 : vector<128x128xf32> to vector<128x128xbf16>
    %cst_12 = arith.constant dense<0.000000e+00> : vector<128x128xf32>
    %18 = tpu.matmul %0, %17, %cst_12 {dimension_numbers = #tpu.dot_dimension_numbers<[1], [0], [0], [1], [0, 0, 1, 1], [], []>} : vector<128x128xbf16>, vector<128x128xbf16>, vector<128x128xf32> -> vector<128x128xf32>
    %19 = vector.extract_strided_slice %1 {offsets = [1, 0], sizes = [1, 128], strides = [1, 1]} : vector<4x128xf32> to vector<1x128xf32>
    %20 = vector.shape_cast %19 : vector<1x128xf32> to vector<128xf32>
    %21 = vector.shape_cast %20 : vector<128xf32> to vector<1x128xf32>
    %22 = vector.broadcast %21 : vector<1x128xf32> to vector<128x128xf32>
    %23 = arith.addf %18, %22 : vector<128x128xf32>
    %cst_13 = arith.constant 0.000000e+00 : f32
    %24 = vector.broadcast %cst_13 : f32 to vector<128x128xf32>
    %25 = arith.maximumf %23, %24 : vector<128x128xf32>
    %26 = arith.truncf %25 : vector<128x128xf32> to vector<128x128xbf16>
    %c2 = arith.constant 2 : index
    %c0_14 = arith.constant 0 : index
    %c0_15 = arith.constant 0 : index
    %27 = vector.load %arg3[%c2, %c0_14, %c0_15] : memref<4x128x128xbf16, #tpu.memory_space<vmem>>, vector<1x128x128xbf16>
    %28 = vector.shape_cast %27 : vector<1x128x128xbf16> to vector<128x128xbf16>
    %cst_16 = arith.constant dense<0.000000e+00> : vector<128x128xf32>
    %29 = tpu.matmul %26, %28, %cst_16 {dimension_numbers = #tpu.dot_dimension_numbers<[1], [0], [0], [1], [0, 0, 1, 1], [], []>} : vector<128x128xbf16>, vector<128x128xbf16>, vector<128x128xf32> -> vector<128x128xf32>
    %30 = arith.truncf %29 : vector<128x128xf32> to vector<128x128xbf16>
    %cst_17 = arith.constant dense<0.000000e+00> : vector<128x128xf32>
    %31 = tpu.matmul %0, %30, %cst_17 {dimension_numbers = #tpu.dot_dimension_numbers<[1], [0], [0], [1], [0, 0, 1, 1], [], []>} : vector<128x128xbf16>, vector<128x128xbf16>, vector<128x128xf32> -> vector<128x128xf32>
    %32 = vector.extract_strided_slice %1 {offsets = [2, 0], sizes = [1, 128], strides = [1, 1]} : vector<4x128xf32> to vector<1x128xf32>
    %33 = vector.shape_cast %32 : vector<1x128xf32> to vector<128xf32>
    %34 = vector.shape_cast %33 : vector<128xf32> to vector<1x128xf32>
    %35 = vector.broadcast %34 : vector<1x128xf32> to vector<128x128xf32>
    %36 = arith.addf %31, %35 : vector<128x128xf32>
    %cst_18 = arith.constant 0.000000e+00 : f32
    %37 = vector.broadcast %cst_18 : f32 to vector<128x128xf32>
    %38 = arith.maximumf %36, %37 : vector<128x128xf32>
    %39 = arith.truncf %38 : vector<128x128xf32> to vector<128x128xbf16>
    %c3 = arith.constant 3 : index
    %c0_19 = arith.constant 0 : index
    %c0_20 = arith.constant 0 : index
    %40 = vector.load %arg3[%c3, %c0_19, %c0_20] : memref<4x128x128xbf16, #tpu.memory_space<vmem>>, vector<1x128x128xbf16>
    %41 = vector.shape_cast %40 : vector<1x128x128xbf16> to vector<128x128xbf16>
    %cst_21 = arith.constant dense<0.000000e+00> : vector<128x128xf32>
    %42 = tpu.matmul %39, %41, %cst_21 {dimension_numbers = #tpu.dot_dimension_numbers<[1], [0], [0], [1], [0, 0, 1, 1], [], []>} : vector<128x128xbf16>, vector<128x128xbf16>, vector<128x128xf32> -> vector<128x128xf32>
    %43 = vector.extract_strided_slice %1 {offsets = [3, 0], sizes = [1, 128], strides = [1, 1]} : vector<4x128xf32> to vector<1x128xf32>
    %44 = vector.shape_cast %43 : vector<1x128xf32> to vector<128xf32>
    %45 = vector.shape_cast %44 : vector<128xf32> to vector<1x128xf32>
    %46 = vector.broadcast %45 : vector<1x128xf32> to vector<128x128xf32>
    %47 = arith.addf %42, %46 : vector<128x128xf32>
    %c0_22 = arith.constant 0 : index
    %c0_23 = arith.constant 0 : index
    %48 = vector.load %arg5[%c0_22, %c0_23] : memref<128x128xf32, #tpu.memory_space<vmem>>, vector<128x128xf32>
    tpu.vector_store %arg5[%c0_22, %c0_23], %47 {strides = array<i32>} : memref<128x128xf32, #tpu.memory_space<vmem>>, vector<128x128xf32>,
    return
  }
  func.func @transform_0(%arg0: i32) -> (i32, i32) {
    %c0_i32 = arith.constant 0 : i32
    %c0_i32_0 = arith.constant 0 : i32
    %c0_i32_1 = arith.constant 0 : i32
    return %c0_i32, %c0_i32_0 : i32, i32
  }
  func.func @transform_1(%arg0: i32) -> (i32, i32) {
    %c0_i32 = arith.constant 0 : i32
    %c0_i32_0 = arith.constant 0 : i32
    %c0_i32_1 = arith.constant 0 : i32
    return %c0_i32, %c0_i32_0 : i32, i32
  }
  func.func @transform_2(%arg0: i32) -> (i32, i32, i32) {
    %c0_i32 = arith.constant 0 : i32
    %c0_i32_0 = arith.constant 0 : i32
    %c0_i32_1 = arith.constant 0 : i32
    %c0_i32_2 = arith.constant 0 : i32
    return %c0_i32, %c0_i32_0, %c0_i32_1 : i32, i32, i32
  }
  func.func @transform_3(%arg0: i32) -> (i32, i32) {
    %c0_i32 = arith.constant 0 : i32
    %c0_i32_0 = arith.constant 0 : i32
    %c0_i32_1 = arith.constant 0 : i32
    return %c0_i32, %c0_i32_0 : i32, i32
  }
  func.func @transform_4(%arg0: i32) -> (i32, i32) {
    %c0_i32 = arith.constant 0 : i32
    %c0_i32_0 = arith.constant 0 : i32
    %c0_i32_1 = arith.constant 0 : i32
    return %c0_i32, %c0_i32_0 : i32, i32
  }
}

</mosaic_0001>

<llo_original>
// kernel: tpu_custom_call.1
$region0: #{tpu_custom_call.1}
  #allocation0 [shape = 'u32[]', space=smem, size = 0x4, offset = 0x4, fixed_abs, tag = 'smem constant byte address 0x4 - core index']
  #allocation1 [shape = 'u32[144,128]{1,0:T(1,128)}', space=vmem, size = 0x12000, scoped, tag = 'internal scratch']
  %s0 = inlined_call_operand.hbm [shape: bf16[128,128], index: 0, kind: input, shape index: {}]
  %s1 = inlined_call_operand.hbm [shape: bf16[128,128], index: 1, kind: input, shape index: {}]
  %s2 = inlined_call_operand.hbm [shape: bf16[4,128,128], index: 2, kind: input, shape index: {}]
  %s3 = inlined_call_operand.vmem [shape: f32[4,128], index: 3, kind: input, shape index: {}]
  %s4 = inlined_call_operand.hbm [shape: f32[128,128], index: 4, kind: output, shape index: {}]
  %s5 = sld [smem:[#allocation0]]
  $region38: #{tpu_custom_call.1} parent=0
    _
  %s7 = ssub.s32 1, %s5
  %s8 = scalar_select 0, %s7, %s5
  $region1: #{tpu_custom_call.1} parent=0
    #allocation2 [shape = 'u8[32768]{0}', space=vmem, size = 0x8000, scoped, tag = 'input window, operand 0, single buffered']
    #allocation3 [shape = 's32[1]{0}', space=sflag, size = 0x4, scoped, tag = 'scoped memory for tpu_custom_call.1']
    #allocation4 [shape = 's32[1]{0}', space=sflag, size = 0x4, scoped, tag = 'scoped memory for tpu_custom_call.1']
    #allocation5 [shape = 'u8[32768]{0}', space=vmem, size = 0x8000, scoped, tag = 'input window, operand 1, single buffered']
    #allocation6 [shape = 's32[1]{0}', space=sflag, size = 0x4, scoped, tag = 'scoped memory for tpu_custom_call.1']
    #allocation7 [shape = 'u8[131072]{0}', space=vmem, size = 0x20000, scoped, tag = 'input window, operand 2, single buffered']
    #allocation8 [shape = 'u8[65536]{0}', space=vmem, size = 0x10000, scoped, tag = 'output window, operand 0, single buffered']
    %9 = vsyncpa [#allocation3], 0
    %10 = vsyncpa [#allocation6], 0
    %11 = vsyncpa [#allocation4], 0
    // Predicated region
    $region2: #{tpu_custom_call.1} parent=1 // pred_check
      _
    $region3: #{tpu_custom_call.1} parent=1 // pred_check_branch
      %13 = sbr.rel (0) target = $region5
    $region4: #{tpu_custom_call.1} parent=1 // pred_region
      %s15 = ssub.s32 1024, 1024
      %16 = vsyncadd [#allocation3], %s15
      %s17 = sshll.u32 [#allocation2], 4
      %s18 = int_to_ptr.vmem [resolvable:$true] %s17
      %23 = dma.hbm_to_vmem [thread:$0]  %s0, 1024, %s18, [#allocation3], 64, 64, 4
    $region5: #{tpu_custom_call.1} parent=1 // pred_fallthru
      _
    // Predicated region
    $region6: #{tpu_custom_call.1} parent=1 // pred_check
      _
    $region7: #{tpu_custom_call.1} parent=1 // pred_check_branch
      %25 = sbr.rel (0) target = $region9
    $region8: #{tpu_custom_call.1} parent=1 // pred_region
      %s27 = ssub.s32 1024, 1024
      %28 = vsyncadd [#allocation6], %s27
      %s29 = sshll.u32 [#allocation5], 4
      %s30 = int_to_ptr.vmem [resolvable:$true] %s29
      %35 = dma.hbm_to_vmem [thread:$0]  %s1, 1024, %s30, [#allocation6], 64, 64, 4
    $region9: #{tpu_custom_call.1} parent=1 // pred_fallthru
      _
    // Predicated region
    $region10: #{tpu_custom_call.1} parent=1 // pred_check
      _
    $region11: #{tpu_custom_call.1} parent=1 // pred_check_branch
      %37 = sbr.rel (0) target = $region13
    $region12: #{tpu_custom_call.1} parent=1 // pred_region
      %s39 = ssub.s32 4096, 4096
      %40 = vsyncadd [#allocation6], %s39
      %s41 = sshll.u32 [#allocation7], 4
      %s42 = int_to_ptr.vmem [resolvable:$true] %s41
      %47 = dma.hbm_to_vmem [thread:$0]  %s2, 4096, %s42, [#allocation6], 64, 64, 4
    $region13: #{tpu_custom_call.1} parent=1 // pred_fallthru
      _
    // Predicated region
    $region14: #{tpu_custom_call.1} parent=1 // pred_check
      _
    $region15: #{tpu_custom_call.1} parent=1 // pred_check_branch
      %49 = sbr.rel (0) target = $region17
    $region16: #{tpu_custom_call.1} parent=1 // pred_region
      _
    $region17: #{tpu_custom_call.1} parent=1 // pred_fallthru
      _
    // Predicated region
    $region18: #{tpu_custom_call.1} parent=1 // pred_check
      _
    $region19: #{tpu_custom_call.1} parent=1 // pred_check_branch
      %51 = sbr.rel (0) target = $region21
    $region20: #{tpu_custom_call.1} parent=1 // pred_region
      %52 = dma.done [#allocation3], 1024
    $region21: #{tpu_custom_call.1} parent=1 // pred_fallthru
      _
    // Predicated region
    $region22: #{tpu_custom_call.1} parent=1 // pred_check
      _
    $region23: #{tpu_custom_call.1} parent=1 // pred_check_branch
      %54 = sbr.rel (0) target = $region25
    $region24: #{tpu_custom_call.1} parent=1 // pred_region
      %55 = dma.done [#allocation6], 1024
    $region25: #{tpu_custom_call.1} parent=1 // pred_fallthru
      _
    // Predicated region
    $region26: #{tpu_custom_call.1} parent=1 // pred_check
      _
    $region27: #{tpu_custom_call.1} parent=1 // pred_check_branch
      %57 = sbr.rel (0) target = $region29
    $region28: #{tpu_custom_call.1} parent=1 // pred_region
      %58 = dma.done [#allocation6], 4096
    $region29: #{tpu_custom_call.1} parent=1 // pred_fallthru
      _
    %v60 = vld [vmem:[#allocation5] sm:$0xf]
    %v61 = vld [vmem:[#allocation5 + $0x4] sm:$0xf]
    %v62 = vld [vmem:[#allocation5 + $0x8] sm:$0xf]
    %v63 = vld [vmem:[#allocation5 + $0xc] sm:$0xf]
    %v64 = vld [vmem:[#allocation5 + $0x10] sm:$0xf]
    %v65 = vld [vmem:[#allocation5 + $0x14] sm:$0xf]
    %v66 = vld [vmem:[#allocation5 + $0x18] sm:$0xf]
    %v67 = vld [vmem:[#allocation5 + $0x1c] sm:$0xf]
    %v68 = vld [vmem:[#allocation5 + $0x20] sm:$0xf]
    %v69 = vld [vmem:[#allocation5 + $0x24] sm:$0xf]
    %v70 = vld [vmem:[#allocation5 + $0x28] sm:$0xf]
    %v71 = vld [vmem:[#allocation5 + $0x2c] sm:$0xf]
    %v72 = vld [vmem:[#allocation5 + $0x30] sm:$0xf]
    %v73 = vld [vmem:[#allocation5 + $0x34] sm:$0xf]
    %v74 = vld [vmem:[#allocation5 + $0x38] sm:$0xf]
    %v75 = vld [vmem:[#allocation5 + $0x3c] sm:$0xf]
    %v76 = vld [vmem:[%s3] sm:$0xf]
    %v77 = vld [vmem:[#allocation2] sm:$0xf]
    %v78 = vld [vmem:[#allocation2 + $0x4] sm:$0xf]
    %v79 = vld [vmem:[#allocation2 + $0x8] sm:$0xf]
    %v80 = vld [vmem:[#allocation2 + $0xc] sm:$0xf]
    %v81 = vld [vmem:[#allocation2 + $0x10] sm:$0xf]
    %v82 = vld [vmem:[#allocation2 + $0x14] sm:$0xf]
    %v83 = vld [vmem:[#allocation2 + $0x18] sm:$0xf]
    %v84 = vld [vmem:[#allocation2 + $0x1c] sm:$0xf]
    %v85 = vld [vmem:[#allocation2 + $0x20] sm:$0xf]
    %v86 = vld [vmem:[#allocation2 + $0x24] sm:$0xf]
    %v87 = vld [vmem:[#allocation2 + $0x28] sm:$0xf]
    %v88 = vld [vmem:[#allocation2 + $0x2c] sm:$0xf]
    %v89 = vld [vmem:[#allocation2 + $0x30] sm:$0xf]
    %v90 = vld [vmem:[#allocation2 + $0x34] sm:$0xf]
    %v91 = vld [vmem:[#allocation2 + $0x38] sm:$0xf]
    %v92 = vld [vmem:[#allocation2 + $0x3c] sm:$0xf]
    %v93 = vld [vmem:[#allocation7] sm:$0xf]
    %v94 = vld [vmem:[#allocation7 + $0x4] sm:$0xf]
    %v95 = vld [vmem:[#allocation7 + $0x8] sm:$0xf]
    %v96 = vld [vmem:[#allocation7 + $0xc] sm:$0xf]
    %v97 = vld [vmem:[#allocation7 + $0x10] sm:$0xf]
    %v98 = vld [vmem:[#allocation7 + $0x14] sm:$0xf]
    %v99 = vld [vmem:[#allocation7 + $0x18] sm:$0xf]
    %v100 = vld [vmem:[#allocation7 + $0x1c] sm:$0xf]
    %v101 = vld [vmem:[#allocation7 + $0x20] sm:$0xf]
    %v102 = vld [vmem:[#allocation7 + $0x24] sm:$0xf]
    %v103 = vld [vmem:[#allocation7 + $0x28] sm:$0xf]
    %v104 = vld [vmem:[#allocation7 + $0x2c] sm:$0xf]
    %v105 = vld [vmem:[#allocation7 + $0x30] sm:$0xf]
    %v106 = vld [vmem:[#allocation7 + $0x34] sm:$0xf]
    %v107 = vld [vmem:[#allocation7 + $0x38] sm:$0xf]
    %v108 = vld [vmem:[#allocation7 + $0x3c] sm:$0xf]
    %v109 = vlaneseq
    %v110 = vshrl.u32 %v109, 7
    %v111 = vsub.s32 0, %v110
    %v112 = vrot.slane %v76, %v111
    %v129 = vunpack.c.l.b16 %v77
    %v130 = vunpack.c.l.b16 %v78
    %v131 = vunpack.c.l.b16 %v79
    %v132 = vunpack.c.l.b16 %v80
    %v133 = vunpack.c.l.b16 %v81
    %v134 = vunpack.c.l.b16 %v82
    %v135 = vunpack.c.l.b16 %v83
    %v136 = vunpack.c.l.b16 %v84
    %v137 = vunpack.c.l.b16 %v85
    %v138 = vunpack.c.l.b16 %v86
    %v139 = vunpack.c.l.b16 %v87
    %v140 = vunpack.c.l.b16 %v88
    %v141 = vunpack.c.l.b16 %v89
    %v142 = vunpack.c.l.b16 %v90
    %v143 = vunpack.c.l.b16 %v91
    %v144 = vunpack.c.l.b16 %v92
    %v145 = vpack.c.b16 %v130, %v129
    %v146 = vpack.c.b16 %v132, %v131
    %v147 = vpack.c.b16 %v134, %v133
    %v148 = vpack.c.b16 %v136, %v135
    %v149 = vpack.c.b16 %v138, %v137
    %v150 = vpack.c.b16 %v140, %v139
    %v151 = vpack.c.b16 %v142, %v141
    %v152 = vpack.c.b16 %v144, %v143
    %v177 = vunpack.c.l.b16 %v93
    %v178 = vunpack.c.l.b16 %v94
    %v179 = vunpack.c.l.b16 %v95
    %v180 = vunpack.c.l.b16 %v96
    %v181 = vunpack.c.l.b16 %v97
    %v182 = vunpack.c.l.b16 %v98
    %v183 = vunpack.c.l.b16 %v99
    %v184 = vunpack.c.l.b16 %v100
    %v185 = vunpack.c.l.b16 %v101
    %v186 = vunpack.c.l.b16 %v102
    %v187 = vunpack.c.l.b16 %v103
    %v188 = vunpack.c.l.b16 %v104
    %v189 = vunpack.c.l.b16 %v105
    %v190 = vunpack.c.l.b16 %v106
    %v191 = vunpack.c.l.b16 %v107
    %v192 = vunpack.c.l.b16 %v108
    %v193 = vpack.c.b16 %v178, %v177
    %v194 = vpack.c.b16 %v180, %v179
    %v195 = vpack.c.b16 %v182, %v181
    %v196 = vpack.c.b16 %v184, %v183
    %v197 = vpack.c.b16 %v186, %v185
    %v198 = vpack.c.b16 %v188, %v187
    %v199 = vpack.c.b16 %v190, %v189
    %v200 = vpack.c.b16 %v192, %v191
    %209 = vmatprep.subr.bf16.mxu0 0
    %210 = vmatpush1.bf16.msra.mxu0 %v193
    %211 = vmatprep.subr.bf16.mxu0 0
    %212 = vmatpush1.bf16.msra.mxu0 %v194
    %213 = vmatprep.subr.bf16.mxu0 0
    %214 = vmatpush1.bf16.msra.mxu0 %v195
    %215 = vmatprep.subr.bf16.mxu0 0
    %216 = vmatpush1.bf16.msra.mxu0 %v196
    %217 = vmatprep.subr.bf16.mxu0 0
    %218 = vmatpush1.bf16.msra.mxu0 %v197
    %219 = vmatprep.subr.bf16.mxu0 0
    %220 = vmatpush1.bf16.msra.mxu0 %v198
    %221 = vmatprep.subr.bf16.mxu0 0
    %222 = vmatpush1.bf16.msra.mxu0 %v199
    %223 = vmatprep.subr.bf16.mxu0 0
    %224 = vmatpush1.bf16.msra.mxu0 %v200
    %225 = vmatprep.subr.bf16.mxu0 0
    %226 = vmatpush1.bf16.msra.mxu0 0
    %227 = vmatprep.subr.bf16.mxu0 0
    %228 = vmatpush1.bf16.msra.mxu0 0
    %229 = vmatprep.subr.bf16.mxu0 0
    %230 = vmatpush1.bf16.msra.mxu0 0
    %231 = vmatprep.subr.bf16.mxu0 0
    %232 = vmatpush1.bf16.msra.mxu0 0
    %233 = vmatprep.subr.bf16.mxu0 0
    %234 = vmatpush1.bf16.msra.mxu0 0
    %235 = vmatprep.subr.bf16.mxu0 0
    %236 = vmatpush1.bf16.msra.mxu0 0
    %237 = vmatprep.subr.bf16.mxu0 0
    %238 = vmatpush1.bf16.msra.mxu0 0
    %239 = vmatprep.subr.bf16.mxu0 0
    %240 = vmatpush1.bf16.msra.mxu0 0
    %241 = vmatprep.mubr.bf16.mxu0 0
    %242 = vmatmul.mubr.bf16.gmra.mrb[0].mxu0 %v145
    %v243 = vpop.f32.mrb[0].mxu0
    %v244 = vadd.f32 %v112, %v243
    %v245 = vpop.f32.mrb[0].mxu0
    %v246 = vpop.f32.mrb[0].mxu0
    %v247 = vadd.f32 %v112, %v246
    %v248 = vpop.f32.mrb[0].mxu0
    %249 = vmatprep.mubr.bf16.mxu0 0
    %250 = vmatmul.mubr.bf16.gmra.mrb[0].mxu0 %v146
    %v251 = vpop.f32.mrb[0].mxu0
    %v252 = vadd.f32 %v112, %v251
    %v253 = vpop.f32.mrb[0].mxu0
    %v254 = vpop.f32.mrb[0].mxu0
    %v255 = vadd.f32 %v112, %v254
    %v256 = vpop.f32.mrb[0].mxu0
    %257 = vmatprep.mubr.bf16.mxu0 0
    %258 = vmatmul.mubr.bf16.gmra.mrb[0].mxu0 %v147
    %v259 = vpop.f32.mrb[0].mxu0
    %v260 = vadd.f32 %v112, %v259
    %v261 = vpop.f32.mrb[0].mxu0
    %v262 = vpop.f32.mrb[0].mxu0
    %v263 = vadd.f32 %v112, %v262
    %v264 = vpop.f32.mrb[0].mxu0
    %265 = vmatprep.mubr.bf16.mxu0 0
    %266 = vmatmul.mubr.bf16.gmra.mrb[0].mxu0 %v148
    %v267 = vpop.f32.mrb[0].mxu0
    %v268 = vadd.f32 %v112, %v267
    %v269 = vpop.f32.mrb[0].mxu0
    %v270 = vpop.f32.mrb[0].mxu0
    %v271 = vadd.f32 %v112, %v270
    %v272 = vpop.f32.mrb[0].mxu0
    %273 = vmatprep.mubr.bf16.mxu0 0
    %274 = vmatmul.mubr.bf16.gmra.mrb[0].mxu0 %v149
    %v275 = vpop.f32.mrb[0].mxu0
    %v276 = vadd.f32 %v112, %v275
    %v277 = vpop.f32.mrb[0].mxu0
    %v278 = vpop.f32.mrb[0].mxu0
    %v279 = vadd.f32 %v112, %v278
    %v280 = vpop.f32.mrb[0].mxu0
    %281 = vmatprep.mubr.bf16.mxu0 0
    %282 = vmatmul.mubr.bf16.gmra.mrb[0].mxu0 %v150
    %v283 = vpop.f32.mrb[0].mxu0
    %v284 = vadd.f32 %v112, %v283
    %v285 = vpop.f32.mrb[0].mxu0
    %v286 = vpop.f32.mrb[0].mxu0
    %v287 = vadd.f32 %v112, %v286
    %v288 = vpop.f32.mrb[0].mxu0
    %289 = vmatprep.mubr.bf16.mxu0 0
    %290 = vmatmul.mubr.bf16.gmra.mrb[0].mxu0 %v151
    %v291 = vpop.f32.mrb[0].mxu0
    %v292 = vadd.f32 %v112, %v291
    %v293 = vpop.f32.mrb[0].mxu0
    %v294 = vpop.f32.mrb[0].mxu0
    %v295 = vadd.f32 %v112, %v294
    %v296 = vpop.f32.mrb[0].mxu0
    %297 = vmatprep.mubr.bf16.mxu0 0
    %298 = vmatmul.mubr.bf16.gmra.mrb[0].mxu0 %v152
    %v299 = vpop.f32.mrb[0].mxu0
    %v300 = vadd.f32 %v112, %v299
    %v301 = vpop.f32.mrb[0].mxu0
    %v302 = vpop.f32.mrb[0].mxu0
    %v303 = vadd.f32 %v112, %v302
    %v304 = vpop.f32.mrb[0].mxu0
    %305 = vdwg.mxu0
    %v306 = vmax.f32 %v244, 0.0
    %v307 = vmax.f32 %v247, 0.0
    %v308 = vmax.f32 %v252, 0.0
    %v309 = vmax.f32 %v255, 0.0
    %v310 = vmax.f32 %v260, 0.0
    %v311 = vmax.f32 %v263, 0.0
    %v312 = vmax.f32 %v268, 0.0
    %v313 = vmax.f32 %v271, 0.0
    %v314 = vmax.f32 %v276, 0.0
    %v315 = vmax.f32 %v279, 0.0
    %v316 = vmax.f32 %v284, 0.0
    %v317 = vmax.f32 %v287, 0.0
    %v318 = vmax.f32 %v292, 0.0
    %v319 = vmax.f32 %v295, 0.0
    %v320 = vmax.f32 %v300, 0.0
    %v321 = vmax.f32 %v303, 0.0
    %v322 = vpack.c.bf16 %v307, %v306
    %v323 = vpack.c.bf16 %v309, %v308
    %v324 = vpack.c.bf16 %v311, %v310
    %v325 = vpack.c.bf16 %v313, %v312
    %v326 = vpack.c.bf16 %v315, %v314
    %v327 = vpack.c.bf16 %v317, %v316
    %v328 = vpack.c.bf16 %v319, %v318
    %v329 = vpack.c.bf16 %v321, %v320
    %s330 = scalar_lea.vmem [#allocation7], 64
    %v331 = vld [vmem:[%s330] sm:$0xf]
    %v332 = vld [vmem:[%s330 + $0x4] sm:$0xf]
    %v333 = vld [vmem:[%s330 + $0x8] sm:$0xf]
    %v334 = vld [vmem:[%s330 + $0xc] sm:$0xf]
    %v335 = vld [vmem:[%s330 + $0x10] sm:$0xf]
    %v336 = vld [vmem:[%s330 + $0x14] sm:$0xf]
    %v337 = vld [vmem:[%s330 + $0x18] sm:$0xf]
    %v338 = vld [vmem:[%s330 + $0x1c] sm:$0xf]
    %v339 = vld [vmem:[%s330 + $0x20] sm:$0xf]
    %v340 = vld [vmem:[%s330 + $0x24] sm:$0xf]
    %v341 = vld [vmem:[%s330 + $0x28] sm:$0xf]
    %v342 = vld [vmem:[%s330 + $0x2c] sm:$0xf]
    %v343 = vld [vmem:[%s330 + $0x30] sm:$0xf]
    %v344 = vld [vmem:[%s330 + $0x34] sm:$0xf]
    %v345 = vld [vmem:[%s330 + $0x38] sm:$0xf]
    %v346 = vld [vmem:[%s330 + $0x3c] sm:$0xf]
    %v363 = vunpack.c.l.b16 %v331
    %v364 = vunpack.c.l.b16 %v332
    %v365 = vunpack.c.l.b16 %v333
    %v366 = vunpack.c.l.b16 %v334
    %v367 = vunpack.c.l.b16 %v335
    %v368 = vunpack.c.l.b16 %v336
    %v369 = vunpack.c.l.b16 %v337
    %v370 = vunpack.c.l.b16 %v338
    %v371 = vunpack.c.l.b16 %v339
    %v372 = vunpack.c.l.b16 %v340
    %v373 = vunpack.c.l.b16 %v341
    %v374 = vunpack.c.l.b16 %v342
    %v375 = vunpack.c.l.b16 %v343
    %v376 = vunpack.c.l.b16 %v344
    %v377 = vunpack.c.l.b16 %v345
    %v378 = vunpack.c.l.b16 %v346
    %v379 = vpack.c.b16 %v364, %v363
    %v380 = vpack.c.b16 %v366, %v365
    %v381 = vpack.c.b16 %v368, %v367
    %v382 = vpack.c.b16 %v370, %v369
    %v383 = vpack.c.b16 %v372, %v371
    %v384 = vpack.c.b16 %v374, %v373
    %v385 = vpack.c.b16 %v376, %v375
    %v386 = vpack.c.b16 %v378, %v377
    %395 = vmatprep.subr.bf16.mxu0 0
    %396 = vmatpush1.bf16.msra.mxu0 %v379
    %397 = vmatprep.subr.bf16.mxu0 0
    %398 = vmatpush1.bf16.msra.mxu0 %v380
    %399 = vmatprep.subr.bf16.mxu0 0
    %400 = vmatpush1.bf16.msra.mxu0 %v381
    %401 = vmatprep.subr.bf16.mxu0 0
    %402 = vmatpush1.bf16.msra.mxu0 %v382
    %403 = vmatprep.subr.bf16.mxu0 0
    %404 = vmatpush1.bf16.msra.mxu0 %v383
    %405 = vmatprep.subr.bf16.mxu0 0
    %406 = vmatpush1.bf16.msra.mxu0 %v384
    %407 = vmatprep.subr.bf16.mxu0 0
    %408 = vmatpush1.bf16.msra.mxu0 %v385
    %409 = vmatprep.subr.bf16.mxu0 0
    %410 = vmatpush1.bf16.msra.mxu0 %v386
    %411 = vmatprep.subr.bf16.mxu0 0
    %412 = vmatpush1.bf16.msra.mxu0 0
    %413 = vmatprep.subr.bf16.mxu0 0
    %414 = vmatpush1.bf16.msra.mxu0 0
    %415 = vmatprep.subr.bf16.mxu0 0
    %416 = vmatpush1.bf16.msra.mxu0 0
    %417 = vmatprep.subr.bf16.mxu0 0
    %418 = vmatpush1.bf16.msra.mxu0 0
    %419 = vmatprep.subr.bf16.mxu0 0
    %420 = vmatpush1.bf16.msra.mxu0 0
    %421 = vmatprep.subr.bf16.mxu0 0
    %422 = vmatpush1.bf16.msra.mxu0 0
    %423 = vmatprep.subr.bf16.mxu0 0
    %424 = vmatpush1.bf16.msra.mxu0 0
    %425 = vmatprep.subr.bf16.mxu0 0
    %426 = vmatpush1.bf16.msra.mxu0 0
    %427 = vmatprep.mubr.bf16.mxu0 0
    %428 = vmatmul.mubr.bf16.gmra.mrb[0].mxu0 %v322
    %v429 = vpop.f32.mrb[0].mxu0
    %v430 = vadd.f32 0.0, %v429
    %v431 = vpop.f32.mrb[0].mxu0
    %v432 = vpop.f32.mrb[0].mxu0
    %v433 = vadd.f32 0.0, %v432
    %v434 = vpop.f32.mrb[0].mxu0
    %435 = vmatprep.mubr.bf16.mxu0 0
    %436 = vmatmul.mubr.bf16.gmra.mrb[0].mxu0 %v323
    %v437 = vpop.f32.mrb[0].mxu0
    %v438 = vadd.f32 0.0, %v437
    %v439 = vpop.f32.mrb[0].mxu0
    %v440 = vpop.f32.mrb[0].mxu0
    %v441 = vadd.f32 0.0, %v440
    %v442 = vpop.f32.mrb[0].mxu0
    %443 = vmatprep.mubr.bf16.mxu0 0
    %444 = vmatmul.mubr.bf16.gmra.mrb[0].mxu0 %v324
    %v445 = vpop.f32.mrb[0].mxu0
    %v446 = vadd.f32 0.0, %v445
    %v447 = vpop.f32.mrb[0].mxu0
    %v448 = vpop.f32.mrb[0].mxu0
    %v449 = vadd.f32 0.0, %v448
    %v450 = vpop.f32.mrb[0].mxu0
    %451 = vmatprep.mubr.bf16.mxu0 0
    %452 = vmatmul.mubr.bf16.gmra.mrb[0].mxu0 %v325
    %v453 = vpop.f32.mrb[0].mxu0
    %v454 = vadd.f32 0.0, %v453
    %v455 = vpop.f32.mrb[0].mxu0
    %v456 = vpop.f32.mrb[0].mxu0
    %v457 = vadd.f32 0.0, %v456
    %v458 = vpop.f32.mrb[0].mxu0
    %459 = vmatprep.mubr.bf16.mxu0 0
    %460 = vmatmul.mubr.bf16.gmra.mrb[0].mxu0 %v326
    %v461 = vpop.f32.mrb[0].mxu0
    %v462 = vadd.f32 0.0, %v461
    %v463 = vpop.f32.mrb[0].mxu0
    %v464 = vpop.f32.mrb[0].mxu0
    %v465 = vadd.f32 0.0, %v464
    %v466 = vpop.f32.mrb[0].mxu0
    %467 = vmatprep.mubr.bf16.mxu0 0
    %468 = vmatmul.mubr.bf16.gmra.mrb[0].mxu0 %v327
    %v469 = vpop.f32.mrb[0].mxu0
    %v470 = vadd.f32 0.0, %v469
    %v471 = vpop.f32.mrb[0].mxu0
    %v472 = vpop.f32.mrb[0].mxu0
    %v473 = vadd.f32 0.0, %v472
    %v474 = vpop.f32.mrb[0].mxu0
    %475 = vmatprep.mubr.bf16.mxu0 0
    %476 = vmatmul.mubr.bf16.gmra.mrb[0].mxu0 %v328
    %v477 = vpop.f32.mrb[0].mxu0
    %v478 = vadd.f32 0.0, %v477
    %v479 = vpop.f32.mrb[0].mxu0
    %v480 = vpop.f32.mrb[0].mxu0
    %v481 = vadd.f32 0.0, %v480
    %v482 = vpop.f32.mrb[0].mxu0
    %483 = vmatprep.mubr.bf16.mxu0 0
    %484 = vmatmul.mubr.bf16.gmra.mrb[0].mxu0 %v329
    %v485 = vpop.f32.mrb[0].mxu0
    %v486 = vadd.f32 0.0, %v485
    %v487 = vpop.f32.mrb[0].mxu0
    %v488 = vpop.f32.mrb[0].mxu0
    %v489 = vadd.f32 0.0, %v488
    %v490 = vpop.f32.mrb[0].mxu0
    %491 = vdwg.mxu0
    %v492 = vpack.c.bf16 %v433, %v430
    %v493 = vpack.c.bf16 %v441, %v438
    %v494 = vpack.c.bf16 %v449, %v446
    %v495 = vpack.c.bf16 %v457, %v454
    %v496 = vpack.c.bf16 %v465, %v462
    %v497 = vpack.c.bf16 %v473, %v470
    %v498 = vpack.c.bf16 %v481, %v478
    %v499 = vpack.c.bf16 %v489, %v486
    %v500 = vlaneseq
    %v501 = vshrl.u32 %v500, 7
    %v502 = vsub.s32 1, %v501
    %v503 = vrot.slane %v76, %v502
    %v520 = vunpack.c.l.b16 %v60
    %v521 = vunpack.c.l.b16 %v61
    %v522 = vunpack.c.l.b16 %v62
    %v523 = vunpack.c.l.b16 %v63
    %v524 = vunpack.c.l.b16 %v64
    %v525 = vunpack.c.l.b16 %v65
    %v526 = vunpack.c.l.b16 %v66
    %v527 = vunpack.c.l.b16 %v67
    %v528 = vunpack.c.l.b16 %v68
    %v529 = vunpack.c.l.b16 %v69
    %v530 = vunpack.c.l.b16 %v70
    %v531 = vunpack.c.l.b16 %v71
    %v532 = vunpack.c.l.b16 %v72
    %v533 = vunpack.c.l.b16 %v73
    %v534 = vunpack.c.l.b16 %v74
    %v535 = vunpack.c.l.b16 %v75
    %v536 = vpack.c.b16 %v521, %v520
    %v537 = vpack.c.b16 %v523, %v522
    %v538 = vpack.c.b16 %v525, %v524
    %v539 = vpack.c.b16 %v527, %v526
    %v540 = vpack.c.b16 %v529, %v528
    %v541 = vpack.c.b16 %v531, %v530
    %v542 = vpack.c.b16 %v533, %v532
    %v543 = vpack.c.b16 %v535, %v534
    %552 = vmatprep.subr.bf16.mxu0 0
    %553 = vmatpush1.bf16.msra.mxu0 %v492
    %554 = vmatprep.subr.bf16.mxu0 0
    %555 = vmatpush1.bf16.msra.mxu0 %v493
    %556 = vmatprep.subr.bf16.mxu0 0
    %557 = vmatpush1.bf16.msra.mxu0 %v494
    %558 = vmatprep.subr.bf16.mxu0 0
    %559 = vmatpush1.bf16.msra.mxu0 %v495
    %560 = vmatprep.subr.bf16.mxu0 0
    %561 = vmatpush1.bf16.msra.mxu0 %v496
    %562 = vmatprep.subr.bf16.mxu0 0
    %563 = vmatpush1.bf16.msra.mxu0 %v497
    %564 = vmatprep.subr.bf16.mxu0 0
    %565 = vmatpush1.bf16.msra.mxu0 %v498
    %566 = vmatprep.subr.bf16.mxu0 0
    %567 = vmatpush1.bf16.msra.mxu0 %v499
    %568 = vmatprep.subr.bf16.mxu0 0
    %569 = vmatpush1.bf16.msra.mxu0 0
    %570 = vmatprep.subr.bf16.mxu0 0
    %571 = vmatpush1.bf16.msra.mxu0 0
    %572 = vmatprep.subr.bf16.mxu0 0
    %573 = vmatpush1.bf16.msra.mxu0 0
    %574 = vmatprep.subr.bf16.mxu0 0
    %575 = vmatpush1.bf16.msra.mxu0 0
    %576 = vmatprep.subr.bf16.mxu0 0
    %577 = vmatpush1.bf16.msra.mxu0 0
    %578 = vmatprep.subr.bf16.mxu0 0
    %579 = vmatpush1.bf16.msra.mxu0 0
    %580 = vmatprep.subr.bf16.mxu0 0
    %581 = vmatpush1.bf16.msra.mxu0 0
    %582 = vmatprep.subr.bf16.mxu0 0
    %583 = vmatpush1.bf16.msra.mxu0 0
    %584 = vmatprep.mubr.bf16.mxu0 0
    %585 = vmatmul.mubr.bf16.gmra.mrb[0].mxu0 %v536
    %v586 = vpop.f32.mrb[0].mxu0
    %v587 = vadd.f32 %v503, %v586
    %v588 = vpop.f32.mrb[0].mxu0
    %v589 = vpop.f32.mrb[0].mxu0
    %v590 = vadd.f32 %v503, %v589
    %v591 = vpop.f32.mrb[0].mxu0
    %592 = vmatprep.mubr.bf16.mxu0 0
    %593 = vmatmul.mubr.bf16.gmra.mrb[0].mxu0 %v537
    %v594 = vpop.f32.mrb[0].mxu0
    %v595 = vadd.f32 %v503, %v594
    %v596 = vpop.f32.mrb[0].mxu0
    %v597 = vpop.f32.mrb[0].mxu0
    %v598 = vadd.f32 %v503, %v597
    %v599 = vpop.f32.mrb[0].mxu0
    %600 = vmatprep.mubr.bf16.mxu0 0
    %601 = vmatmul.mubr.bf16.gmra.mrb[0].mxu0 %v538
    %v602 = vpop.f32.mrb[0].mxu0
    %v603 = vadd.f32 %v503, %v602
    %v604 = vpop.f32.mrb[0].mxu0
    %v605 = vpop.f32.mrb[0].mxu0
    %v606 = vadd.f32 %v503, %v605
    %v607 = vpop.f32.mrb[0].mxu0
    %608 = vmatprep.mubr.bf16.mxu0 0
    %609 = vmatmul.mubr.bf16.gmra.mrb[0].mxu0 %v539
    %v610 = vpop.f32.mrb[0].mxu0
    %v611 = vadd.f32 %v503, %v610
    %v612 = vpop.f32.mrb[0].mxu0
    %v613 = vpop.f32.mrb[0].mxu0
    %v614 = vadd.f32 %v503, %v613
    %v615 = vpop.f32.mrb[0].mxu0
    %616 = vmatprep.mubr.bf16.mxu0 0
    %617 = vmatmul.mubr.bf16.gmra.mrb[0].mxu0 %v540
    %v618 = vpop.f32.mrb[0].mxu0
    %v619 = vadd.f32 %v503, %v618
    %v620 = vpop.f32.mrb[0].mxu0
    %v621 = vpop.f32.mrb[0].mxu0
    %v622 = vadd.f32 %v503, %v621
    %v623 = vpop.f32.mrb[0].mxu0
    %624 = vmatprep.mubr.bf16.mxu0 0
    %625 = vmatmul.mubr.bf16.gmra.mrb[0].mxu0 %v541
    %v626 = vpop.f32.mrb[0].mxu0
    %v627 = vadd.f32 %v503, %v626
    %v628 = vpop.f32.mrb[0].mxu0
    %v629 = vpop.f32.mrb[0].mxu0
    %v630 = vadd.f32 %v503, %v629
    %v631 = vpop.f32.mrb[0].mxu0
    %632 = vmatprep.mubr.bf16.mxu0 0
    %633 = vmatmul.mubr.bf16.gmra.mrb[0].mxu0 %v542
    %v634 = vpop.f32.mrb[0].mxu0
    %v635 = vadd.f32 %v503, %v634
    %v636 = vpop.f32.mrb[0].mxu0
    %v637 = vpop.f32.mrb[0].mxu0
    %v638 = vadd.f32 %v503, %v637
    %v639 = vpop.f32.mrb[0].mxu0
    %640 = vmatprep.mubr.bf16.mxu0 0
    %641 = vmatmul.mubr.bf16.gmra.mrb[0].mxu0 %v543
    %v642 = vpop.f32.mrb[0].mxu0
    %v643 = vadd.f32 %v503, %v642
    %v644 = vpop.f32.mrb[0].mxu0
    %v645 = vpop.f32.mrb[0].mxu0
    %v646 = vadd.f32 %v503, %v645
    %v647 = vpop.f32.mrb[0].mxu0
    %648 = vdwg.mxu0
    %v649 = vmax.f32 %v587, 0.0
    %v650 = vmax.f32 %v590, 0.0
    %v651 = vmax.f32 %v595, 0.0
    %v652 = vmax.f32 %v598, 0.0
    %v653 = vmax.f32 %v603, 0.0
    %v654 = vmax.f32 %v606, 0.0
    %v655 = vmax.f32 %v611, 0.0
    %v656 = vmax.f32 %v614, 0.0
    %v657 = vmax.f32 %v619, 0.0
    %v658 = vmax.f32 %v622, 0.0
    %v659 = vmax.f32 %v627, 0.0
    %v660 = vmax.f32 %v630, 0.0
    %v661 = vmax.f32 %v635, 0.0
    %v662 = vmax.f32 %v638, 0.0
    %v663 = vmax.f32 %v643, 0.0
    %v664 = vmax.f32 %v646, 0.0
    %v665 = vpack.c.bf16 %v650, %v649
    %v666 = vpack.c.bf16 %v652, %v651
    %v667 = vpack.c.bf16 %v654, %v653
    %v668 = vpack.c.bf16 %v656, %v655
    %v669 = vpack.c.bf16 %v658, %v657
    %v670 = vpack.c.bf16 %v660, %v659
    %v671 = vpack.c.bf16 %v662, %v661
    %v672 = vpack.c.bf16 %v664, %v663
    %s673 = scalar_lea.vmem [#allocation7], 128
    %v674 = vld [vmem:[%s673] sm:$0xf]
    %v675 = vld [vmem:[%s673 + $0x4] sm:$0xf]
    %v676 = vld [vmem:[%s673 + $0x8] sm:$0xf]
    %v677 = vld [vmem:[%s673 + $0xc] sm:$0xf]
    %v678 = vld [vmem:[%s673 + $0x10] sm:$0xf]
    %v679 = vld [vmem:[%s673 + $0x14] sm:$0xf]
    %v680 = vld [vmem:[%s673 + $0x18] sm:$0xf]
    %v681 = vld [vmem:[%s673 + $0x1c] sm:$0xf]
    %v682 = vld [vmem:[%s673 + $0x20] sm:$0xf]
    %v683 = vld [vmem:[%s673 + $0x24] sm:$0xf]
    %v684 = vld [vmem:[%s673 + $0x28] sm:$0xf]
    %v685 = vld [vmem:[%s673 + $0x2c] sm:$0xf]
    %v686 = vld [vmem:[%s673 + $0x30] sm:$0xf]
    %v687 = vld [vmem:[%s673 + $0x34] sm:$0xf]
    %v688 = vld [vmem:[%s673 + $0x38] sm:$0xf]
    %v689 = vld [vmem:[%s673 + $0x3c] sm:$0xf]
    %v706 = vunpack.c.l.b16 %v674
    %v707 = vunpack.c.l.b16 %v675
    %v708 = vunpack.c.l.b16 %v676
    %v709 = vunpack.c.l.b16 %v677
    %v710 = vunpack.c.l.b16 %v678
    %v711 = vunpack.c.l.b16 %v679
    %v712 = vunpack.c.l.b16 %v680
    %v713 = vunpack.c.l.b16 %v681
    %v714 = vunpack.c.l.b16 %v682
    %v715 = vunpack.c.l.b16 %v683
    %v716 = vunpack.c.l.b16 %v684
    %v717 = vunpack.c.l.b16 %v685
    %v718 = vunpack.c.l.b16 %v686
    %v719 = vunpack.c.l.b16 %v687
    %v720 = vunpack.c.l.b16 %v688
    %v721 = vunpack.c.l.b16 %v689
    %v722 = vpack.c.b16 %v707, %v706
    %v723 = vpack.c.b16 %v709, %v708
    %v724 = vpack.c.b16 %v711, %v710
    %v725 = vpack.c.b16 %v713, %v712
    %v726 = vpack.c.b16 %v715, %v714
    %v727 = vpack.c.b16 %v717, %v716
    %v728 = vpack.c.b16 %v719, %v718
    %v729 = vpack.c.b16 %v721, %v720
    %738 = vmatprep.subr.bf16.mxu0 0
    %739 = vmatpush1.bf16.msra.mxu0 %v722
    %740 = vmatprep.subr.bf16.mxu0 0
    %741 = vmatpush1.bf16.msra.mxu0 %v723
    %742 = vmatprep.subr.bf16.mxu0 0
    %743 = vmatpush1.bf16.msra.mxu0 %v724
    %744 = vmatprep.subr.bf16.mxu0 0
    %745 = vmatpush1.bf16.msra.mxu0 %v725
    %746 = vmatprep.subr.bf16.mxu0 0
    %747 = vmatpush1.bf16.msra.mxu0 %v726
    %748 = vmatprep.subr.bf16.mxu0 0
    %749 = vmatpush1.bf16.msra.mxu0 %v727
    %750 = vmatprep.subr.bf16.mxu0 0
    %751 = vmatpush1.bf16.msra.mxu0 %v728
    %752 = vmatprep.subr.bf16.mxu0 0
    %753 = vmatpush1.bf16.msra.mxu0 %v729
    %754 = vmatprep.subr.bf16.mxu0 0
    %755 = vmatpush1.bf16.msra.mxu0 0
    %756 = vmatprep.subr.bf16.mxu0 0
    %757 = vmatpush1.bf16.msra.mxu0 0
    %758 = vmatprep.subr.bf16.mxu0 0
    %759 = vmatpush1.bf16.msra.mxu0 0
    %760 = vmatprep.subr.bf16.mxu0 0
    %761 = vmatpush1.bf16.msra.mxu0 0
    %762 = vmatprep.subr.bf16.mxu0 0
    %763 = vmatpush1.bf16.msra.mxu0 0
    %764 = vmatprep.subr.bf16.mxu0 0
    %765 = vmatpush1.bf16.msra.mxu0 0
    %766 = vmatprep.subr.bf16.mxu0 0
    %767 = vmatpush1.bf16.msra.mxu0 0
    %768 = vmatprep.subr.bf16.mxu0 0
    %769 = vmatpush1.bf16.msra.mxu0 0
    %770 = vmatprep.mubr.bf16.mxu0 0
    %771 = vmatmul.mubr.bf16.gmra.mrb[0].mxu0 %v665
    %v772 = vpop.f32.mrb[0].mxu0
    %v773 = vadd.f32 0.0, %v772
    %v774 = vpop.f32.mrb[0].mxu0
    %v775 = vpop.f32.mrb[0].mxu0
    %v776 = vadd.f32 0.0, %v775
    %v777 = vpop.f32.mrb[0].mxu0
    %778 = vmatprep.mubr.bf16.mxu0 0
    %779 = vmatmul.mubr.bf16.gmra.mrb[0].mxu0 %v666
    %v780 = vpop.f32.mrb[0].mxu0
    %v781 = vadd.f32 0.0, %v780
    %v782 = vpop.f32.mrb[0].mxu0
    %v783 = vpop.f32.mrb[0].mxu0
    %v784 = vadd.f32 0.0, %v783
    %v785 = vpop.f32.mrb[0].mxu0
    %786 = vmatprep.mubr.bf16.mxu0 0
    %787 = vmatmul.mubr.bf16.gmra.mrb[0].mxu0 %v667
    %v788 = vpop.f32.mrb[0].mxu0
    %v789 = vadd.f32 0.0, %v788
    %v790 = vpop.f32.mrb[0].mxu0
    %v791 = vpop.f32.mrb[0].mxu0
    %v792 = vadd.f32 0.0, %v791
    %v793 = vpop.f32.mrb[0].mxu0
    %794 = vmatprep.mubr.bf16.mxu0 0
    %795 = vmatmul.mubr.bf16.gmra.mrb[0].mxu0 %v668
    %v796 = vpop.f32.mrb[0].mxu0
    %v797 = vadd.f32 0.0, %v796
    %v798 = vpop.f32.mrb[0].mxu0
    %v799 = vpop.f32.mrb[0].mxu0
    %v800 = vadd.f32 0.0, %v799
    %v801 = vpop.f32.mrb[0].mxu0
    %802 = vmatprep.mubr.bf16.mxu0 0
    %803 = vmatmul.mubr.bf16.gmra.mrb[0].mxu0 %v669
    %v804 = vpop.f32.mrb[0].mxu0
    %v805 = vadd.f32 0.0, %v804
    %v806 = vpop.f32.mrb[0].mxu0
    %v807 = vpop.f32.mrb[0].mxu0
    %v808 = vadd.f32 0.0, %v807
    %v809 = vpop.f32.mrb[0].mxu0
    %810 = vmatprep.mubr.bf16.mxu0 0
    %811 = vmatmul.mubr.bf16.gmra.mrb[0].mxu0 %v670
    %v812 = vpop.f32.mrb[0].mxu0
    %v813 = vadd.f32 0.0, %v812
    %v814 = vpop.f32.mrb[0].mxu0
    %v815 = vpop.f32.mrb[0].mxu0
    %v816 = vadd.f32 0.0, %v815
    %v817 = vpop.f32.mrb[0].mxu0
    %818 = vmatprep.mubr.bf16.mxu0 0
    %819 = vmatmul.mubr.bf16.gmra.mrb[0].mxu0 %v671
    %v820 = vpop.f32.mrb[0].mxu0
    %v821 = vadd.f32 0.0, %v820
    %v822 = vpop.f32.mrb[0].mxu0
    %v823 = vpop.f32.mrb[0].mxu0
    %v824 = vadd.f32 0.0, %v823
    %v825 = vpop.f32.mrb[0].mxu0
    %826 = vmatprep.mubr.bf16.mxu0 0
    %827 = vmatmul.mubr.bf16.gmra.mrb[0].mxu0 %v672
    %v828 = vpop.f32.mrb[0].mxu0
    %v829 = vadd.f32 0.0, %v828
    %v830 = vpop.f32.mrb[0].mxu0
    %v831 = vpop.f32.mrb[0].mxu0
    %v832 = vadd.f32 0.0, %v831
    %v833 = vpop.f32.mrb[0].mxu0
    %834 = vdwg.mxu0
    %v835 = vpack.c.bf16 %v776, %v773
    %v836 = vpack.c.bf16 %v784, %v781
    %v837 = vpack.c.bf16 %v792, %v789
    %v838 = vpack.c.bf16 %v800, %v797
    %v839 = vpack.c.bf16 %v808, %v805
    %v840 = vpack.c.bf16 %v816, %v813
    %v841 = vpack.c.bf16 %v824, %v821
    %v842 = vpack.c.bf16 %v832, %v829
    %v843 = vlaneseq
    %v844 = vshrl.u32 %v843, 7
    %v845 = vsub.s32 2, %v844
    %v846 = vrot.slane %v76, %v845
    %847 = vmatprep.subr.bf16.mxu0 0
    %848 = vmatpush1.bf16.msra.mxu0 %v835
    %849 = vmatprep.subr.bf16.mxu0 0
    %850 = vmatpush1.bf16.msra.mxu0 %v836
    %851 = vmatprep.subr.bf16.mxu0 0
    %852 = vmatpush1.bf16.msra.mxu0 %v837
    %853 = vmatprep.subr.bf16.mxu0 0
    %854 = vmatpush1.bf16.msra.mxu0 %v838
    %855 = vmatprep.subr.bf16.mxu0 0
    %856 = vmatpush1.bf16.msra.mxu0 %v839
    %857 = vmatprep.subr.bf16.mxu0 0
    %858 = vmatpush1.bf16.msra.mxu0 %v840
    %859 = vmatprep.subr.bf16.mxu0 0
    %860 = vmatpush1.bf16.msra.mxu0 %v841
    %861 = vmatprep.subr.bf16.mxu0 0
    %862 = vmatpush1.bf16.msra.mxu0 %v842
    %863 = vmatprep.subr.bf16.mxu0 0
    %864 = vmatpush1.bf16.msra.mxu0 0
    %865 = vmatprep.subr.bf16.mxu0 0
    %866 = vmatpush1.bf16.msra.mxu0 0
    %867 = vmatprep.subr.bf16.mxu0 0
    %868 = vmatpush1.bf16.msra.mxu0 0
    %869 = vmatprep.subr.bf16.mxu0 0
    %870 = vmatpush1.bf16.msra.mxu0 0
    %871 = vmatprep.subr.bf16.mxu0 0
    %872 = vmatpush1.bf16.msra.mxu0 0
    %873 = vmatprep.subr.bf16.mxu0 0
    %874 = vmatpush1.bf16.msra.mxu0 0
    %875 = vmatprep.subr.bf16.mxu0 0
    %876 = vmatpush1.bf16.msra.mxu0 0
    %877 = vmatprep.subr.bf16.mxu0 0
    %878 = vmatpush1.bf16.msra.mxu0 0
    %879 = vmatprep.mubr.bf16.mxu0 0
    %880 = vmatmul.mubr.bf16.gmra.mrb[0].mxu0 %v536
    %v881 = vpop.f32.mrb[0].mxu0
    %v882 = vadd.f32 %v846, %v881
    %v883 = vpop.f32.mrb[0].mxu0
    %v884 = vpop.f32.mrb[0].mxu0
    %v885 = vadd.f32 %v846, %v884
    %v886 = vpop.f32.mrb[0].mxu0
    %887 = vmatprep.mubr.bf16.mxu0 0
    %888 = vmatmul.mubr.bf16.gmra.mrb[0].mxu0 %v537
    %v889 = vpop.f32.mrb[0].mxu0
    %v890 = vadd.f32 %v846, %v889
    %v891 = vpop.f32.mrb[0].mxu0
    %v892 = vpop.f32.mrb[0].mxu0
    %v893 = vadd.f32 %v846, %v892
    %v894 = vpop.f32.mrb[0].mxu0
    %895 = vmatprep.mubr.bf16.mxu0 0
    %896 = vmatmul.mubr.bf16.gmra.mrb[0].mxu0 %v538
    %v897 = vpop.f32.mrb[0].mxu0
    %v898 = vadd.f32 %v846, %v897
    %v899 = vpop.f32.mrb[0].mxu0
    %v900 = vpop.f32.mrb[0].mxu0
    %v901 = vadd.f32 %v846, %v900
    %v902 = vpop.f32.mrb[0].mxu0
    %903 = vmatprep.mubr.bf16.mxu0 0
    %904 = vmatmul.mubr.bf16.gmra.mrb[0].mxu0 %v539
    %v905 = vpop.f32.mrb[0].mxu0
    %v906 = vadd.f32 %v846, %v905
    %v907 = vpop.f32.mrb[0].mxu0
    %v908 = vpop.f32.mrb[0].mxu0
    %v909 = vadd.f32 %v846, %v908
    %v910 = vpop.f32.mrb[0].mxu0
    %911 = vmatprep.mubr.bf16.mxu0 0
    %912 = vmatmul.mubr.bf16.gmra.mrb[0].mxu0 %v540
    %v913 = vpop.f32.mrb[0].mxu0
    %v914 = vadd.f32 %v846, %v913
    %v915 = vpop.f32.mrb[0].mxu0
    %v916 = vpop.f32.mrb[0].mxu0
    %v917 = vadd.f32 %v846, %v916
    %v918 = vpop.f32.mrb[0].mxu0
    %919 = vmatprep.mubr.bf16.mxu0 0
    %920 = vmatmul.mubr.bf16.gmra.mrb[0].mxu0 %v541
    %v921 = vpop.f32.mrb[0].mxu0
    %v922 = vadd.f32 %v846, %v921
    %v923 = vpop.f32.mrb[0].mxu0
    %v924 = vpop.f32.mrb[0].mxu0
    %v925 = vadd.f32 %v846, %v924
    %v926 = vpop.f32.mrb[0].mxu0
    %927 = vmatprep.mubr.bf16.mxu0 0
    %928 = vmatmul.mubr.bf16.gmra.mrb[0].mxu0 %v542
    %v929 = vpop.f32.mrb[0].mxu0
    %v930 = vadd.f32 %v846, %v929
    %v931 = vpop.f32.mrb[0].mxu0
    %v932 = vpop.f32.mrb[0].mxu0
    %v933 = vadd.f32 %v846, %v932
    %v934 = vpop.f32.mrb[0].mxu0
    %935 = vmatprep.mubr.bf16.mxu0 0
    %936 = vmatmul.mubr.bf16.gmra.mrb[0].mxu0 %v543
    %v937 = vpop.f32.mrb[0].mxu0
    %v938 = vadd.f32 %v846, %v937
    %v939 = vpop.f32.mrb[0].mxu0
    %v940 = vpop.f32.mrb[0].mxu0
    %v941 = vadd.f32 %v846, %v940
    %v942 = vpop.f32.mrb[0].mxu0
    %943 = vdwg.mxu0
    %v944 = vmax.f32 %v882, 0.0
    %v945 = vmax.f32 %v885, 0.0
    %v946 = vmax.f32 %v890, 0.0
    %v947 = vmax.f32 %v893, 0.0
    %v948 = vmax.f32 %v898, 0.0
    %v949 = vmax.f32 %v901, 0.0
    %v950 = vmax.f32 %v906, 0.0
    %v951 = vmax.f32 %v909, 0.0
    %v952 = vmax.f32 %v914, 0.0
    %v953 = vmax.f32 %v917, 0.0
    %v954 = vmax.f32 %v922, 0.0
    %v955 = vmax.f32 %v925, 0.0
    %v956 = vmax.f32 %v930, 0.0
    %v957 = vmax.f32 %v933, 0.0
    %v958 = vmax.f32 %v938, 0.0
    %v959 = vmax.f32 %v941, 0.0
    %v960 = vpack.c.bf16 %v945, %v944
    %v961 = vpack.c.bf16 %v947, %v946
    %v962 = vpack.c.bf16 %v949, %v948
    %v963 = vpack.c.bf16 %v951, %v950
    %v964 = vpack.c.bf16 %v953, %v952
    %v965 = vpack.c.bf16 %v955, %v954
    %v966 = vpack.c.bf16 %v957, %v956
    %v967 = vpack.c.bf16 %v959, %v958
    %s968 = scalar_lea.vmem [#allocation7], 192
    %v969 = vld [vmem:[%s968] sm:$0xf]
    %v970 = vld [vmem:[%s968 + $0x4] sm:$0xf]
    %v971 = vld [vmem:[%s968 + $0x8] sm:$0xf]
    %v972 = vld [vmem:[%s968 + $0xc] sm:$0xf]
    %v973 = vld [vmem:[%s968 + $0x10] sm:$0xf]
    %v974 = vld [vmem:[%s968 + $0x14] sm:$0xf]
    %v975 = vld [vmem:[%s968 + $0x18] sm:$0xf]
    %v976 = vld [vmem:[%s968 + $0x1c] sm:$0xf]
    %v977 = vld [vmem:[%s968 + $0x20] sm:$0xf]
    %v978 = vld [vmem:[%s968 + $0x24] sm:$0xf]
    %v979 = vld [vmem:[%s968 + $0x28] sm:$0xf]
    %v980 = vld [vmem:[%s968 + $0x2c] sm:$0xf]
    %v981 = vld [vmem:[%s968 + $0x30] sm:$0xf]
    %v982 = vld [vmem:[%s968 + $0x34] sm:$0xf]
    %v983 = vld [vmem:[%s968 + $0x38] sm:$0xf]
    %v984 = vld [vmem:[%s968 + $0x3c] sm:$0xf]
    %v985 = vlaneseq
    %v986 = vshrl.u32 %v985, 7
    %v987 = vsub.s32 3, %v986
    %v988 = vrot.slane %v76, %v987
    %v1005 = vunpack.c.l.b16 %v969
    %v1006 = vunpack.c.l.b16 %v970
    %v1007 = vunpack.c.l.b16 %v971
    %v1008 = vunpack.c.l.b16 %v972
    %v1009 = vunpack.c.l.b16 %v973
    %v1010 = vunpack.c.l.b16 %v974
    %v1011 = vunpack.c.l.b16 %v975
    %v1012 = vunpack.c.l.b16 %v976
    %v1013 = vunpack.c.l.b16 %v977
    %v1014 = vunpack.c.l.b16 %v978
    %v1015 = vunpack.c.l.b16 %v979
    %v1016 = vunpack.c.l.b16 %v980
    %v1017 = vunpack.c.l.b16 %v981
    %v1018 = vunpack.c.l.b16 %v982
    %v1019 = vunpack.c.l.b16 %v983
    %v1020 = vunpack.c.l.b16 %v984
    %v1021 = vpack.c.b16 %v1006, %v1005
    %v1022 = vpack.c.b16 %v1008, %v1007
    %v1023 = vpack.c.b16 %v1010, %v1009
    %v1024 = vpack.c.b16 %v1012, %v1011
    %v1025 = vpack.c.b16 %v1014, %v1013
    %v1026 = vpack.c.b16 %v1016, %v1015
    %v1027 = vpack.c.b16 %v1018, %v1017
    %v1028 = vpack.c.b16 %v1020, %v1019
    %1037 = vmatprep.subr.bf16.mxu0 0
    %1038 = vmatpush1.bf16.msra.mxu0 %v1021
    %1039 = vmatprep.subr.bf16.mxu0 0
    %1040 = vmatpush1.bf16.msra.mxu0 %v1022
    %1041 = vmatprep.subr.bf16.mxu0 0
    %1042 = vmatpush1.bf16.msra.mxu0 %v1023
    %1043 = vmatprep.subr.bf16.mxu0 0
    %1044 = vmatpush1.bf16.msra.mxu0 %v1024
    %1045 = vmatprep.subr.bf16.mxu0 0
    %1046 = vmatpush1.bf16.msra.mxu0 %v1025
    %1047 = vmatprep.subr.bf16.mxu0 0
    %1048 = vmatpush1.bf16.msra.mxu0 %v1026
    %1049 = vmatprep.subr.bf16.mxu0 0
    %1050 = vmatpush1.bf16.msra.mxu0 %v1027
    %1051 = vmatprep.subr.bf16.mxu0 0
    %1052 = vmatpush1.bf16.msra.mxu0 %v1028
    %1053 = vmatprep.subr.bf16.mxu0 0
    %1054 = vmatpush1.bf16.msra.mxu0 0
    %1055 = vmatprep.subr.bf16.mxu0 0
    %1056 = vmatpush1.bf16.msra.mxu0 0
    %1057 = vmatprep.subr.bf16.mxu0 0
    %1058 = vmatpush1.bf16.msra.mxu0 0
    %1059 = vmatprep.subr.bf16.mxu0 0
    %1060 = vmatpush1.bf16.msra.mxu0 0
    %1061 = vmatprep.subr.bf16.mxu0 0
    %1062 = vmatpush1.bf16.msra.mxu0 0
    %1063 = vmatprep.subr.bf16.mxu0 0
    %1064 = vmatpush1.bf16.msra.mxu0 0
    %1065 = vmatprep.subr.bf16.mxu0 0
    %1066 = vmatpush1.bf16.msra.mxu0 0
    %1067 = vmatprep.subr.bf16.mxu0 0
    %1068 = vmatpush1.bf16.msra.mxu0 0
    %1069 = vmatprep.mubr.bf16.mxu0 0
    %1070 = vmatmul.mubr.bf16.gmra.mrb[0].mxu0 %v960
    %v1071 = vpop.f32.mrb[0].mxu0
    %v1072 = vadd.f32 %v988, %v1071
    %v1073 = vpop.f32.mrb[0].mxu0
    %v1074 = vpop.f32.mrb[0].mxu0
    %v1075 = vadd.f32 %v988, %v1074
    %v1076 = vpop.f32.mrb[0].mxu0
    %1077 = vmatprep.mubr.bf16.mxu0 0
    %1078 = vmatmul.mubr.bf16.gmra.mrb[0].mxu0 %v961
    %v1079 = vpop.f32.mrb[0].mxu0
    %v1080 = vadd.f32 %v988, %v1079
    %v1081 = vpop.f32.mrb[0].mxu0
    %v1082 = vpop.f32.mrb[0].mxu0
    %v1083 = vadd.f32 %v988, %v1082
    %v1084 = vpop.f32.mrb[0].mxu0
    %1085 = vmatprep.mubr.bf16.mxu0 0
    %1086 = vmatmul.mubr.bf16.gmra.mrb[0].mxu0 %v962
    %v1087 = vpop.f32.mrb[0].mxu0
    %v1088 = vadd.f32 %v988, %v1087
    %v1089 = vpop.f32.mrb[0].mxu0
    %v1090 = vpop.f32.mrb[0].mxu0
    %v1091 = vadd.f32 %v988, %v1090
    %v1092 = vpop.f32.mrb[0].mxu0
    %1093 = vmatprep.mubr.bf16.mxu0 0
    %1094 = vmatmul.mubr.bf16.gmra.mrb[0].mxu0 %v963
    %v1095 = vpop.f32.mrb[0].mxu0
    %v1096 = vadd.f32 %v988, %v1095
    %v1097 = vpop.f32.mrb[0].mxu0
    %v1098 = vpop.f32.mrb[0].mxu0
    %v1099 = vadd.f32 %v988, %v1098
    %v1100 = vpop.f32.mrb[0].mxu0
    %1101 = vmatprep.mubr.bf16.mxu0 0
    %1102 = vmatmul.mubr.bf16.gmra.mrb[0].mxu0 %v964
    %v1103 = vpop.f32.mrb[0].mxu0
    %v1104 = vadd.f32 %v988, %v1103
    %v1105 = vpop.f32.mrb[0].mxu0
    %v1106 = vpop.f32.mrb[0].mxu0
    %v1107 = vadd.f32 %v988, %v1106
    %v1108 = vpop.f32.mrb[0].mxu0
    %1109 = vmatprep.mubr.bf16.mxu0 0
    %1110 = vmatmul.mubr.bf16.gmra.mrb[0].mxu0 %v965
    %v1111 = vpop.f32.mrb[0].mxu0
    %v1112 = vadd.f32 %v988, %v1111
    %v1113 = vpop.f32.mrb[0].mxu0
    %v1114 = vpop.f32.mrb[0].mxu0
    %v1115 = vadd.f32 %v988, %v1114
    %v1116 = vpop.f32.mrb[0].mxu0
    %1117 = vmatprep.mubr.bf16.mxu0 0
    %1118 = vmatmul.mubr.bf16.gmra.mrb[0].mxu0 %v966
    %v1119 = vpop.f32.mrb[0].mxu0
    %v1120 = vadd.f32 %v988, %v1119
    %v1121 = vpop.f32.mrb[0].mxu0
    %v1122 = vpop.f32.mrb[0].mxu0
    %v1123 = vadd.f32 %v988, %v1122
    %v1124 = vpop.f32.mrb[0].mxu0
    %1125 = vmatprep.mubr.bf16.mxu0 0
    %1126 = vmatmul.mubr.bf16.gmra.mrb[0].mxu0 %v967
    %v1127 = vpop.f32.mrb[0].mxu0
    %v1128 = vadd.f32 %v988, %v1127
    %v1129 = vpop.f32.mrb[0].mxu0
    %v1130 = vpop.f32.mrb[0].mxu0
    %v1131 = vadd.f32 %v988, %v1130
    %v1132 = vpop.f32.mrb[0].mxu0
    %1133 = vdwg.mxu0
    %1134 = vst [vmem:[#allocation8] sm:$0xff] %v1072
    %1135 = vst [vmem:[#allocation8 + $0x8] sm:$0xff] %v1075
    %1136 = vst [vmem:[#allocation8 + $0x10] sm:$0xff] %v1080
    %1137 = vst [vmem:[#allocation8 + $0x18] sm:$0xff] %v1083
    %1138 = vst [vmem:[#allocation8 + $0x20] sm:$0xff] %v1088
    %1139 = vst [vmem:[#allocation8 + $0x28] sm:$0xff] %v1091
    %1140 = vst [vmem:[#allocation8 + $0x30] sm:$0xff] %v1096
    %1141 = vst [vmem:[#allocation8 + $0x38] sm:$0xff] %v1099
    %1142 = vst [vmem:[#allocation8 + $0x40] sm:$0xff] %v1104
    %1143 = vst [vmem:[#allocation8 + $0x48] sm:$0xff] %v1107
    %1144 = vst [vmem:[#allocation8 + $0x50] sm:$0xff] %v1112
    %1145 = vst [vmem:[#allocation8 + $0x58] sm:$0xff] %v1115
    %1146 = vst [vmem:[#allocation8 + $0x60] sm:$0xff] %v1120
    %1147 = vst [vmem:[#allocation8 + $0x68] sm:$0xff] %v1123
    %1148 = vst [vmem:[#allocation8 + $0x70] sm:$0xff] %v1128
    %1149 = vst [vmem:[#allocation8 + $0x78] sm:$0xff] %v1131
    // Predicated region
    $region30: #{tpu_custom_call.1} parent=1 // pred_check
      _
    $region31: #{tpu_custom_call.1} parent=1 // pred_check_branch
      %1151 = sbr.rel (0) target = $region33
    $region32: #{tpu_custom_call.1} parent=1 // pred_region
      %s1153 = ssub.s32 2048, 2048
      %1154 = vsyncadd [#allocation4], %s1153
      %s1155 = sshll.u32 [#allocation8], 4
      %s1156 = int_to_ptr.vmem [resolvable:$true] %s1155
      %1161 = dma.vmem_to_hbm [thread:$0]  %s1156, 2048, %s4, [#allocation4], 128, 128, 8
    $region33: #{tpu_custom_call.1} parent=1 // pred_fallthru
      _
    // Predicated region
    $region34: #{tpu_custom_call.1} parent=1 // pred_check
      _
    $region35: #{tpu_custom_call.1} parent=1 // pred_check_branch
      %1163 = sbr.rel (0) target = $region37
    $region36: #{tpu_custom_call.1} parent=1 // pred_region
      %1164 = dma.done [#allocation4], 2048
    $region37: #{tpu_custom_call.1} parent=1 // pred_fallthru
      _
    %1165 = vsyncpa [#allocation3], 1
    %1166 = vsyncpa [#allocation6], 1
    %1167 = vsyncpa [#allocation4], 1

</llo_original>
